<compile_context>
chip_gen: v5e
topology: v5e:2x2
jax: 0.10.0
libtpu: 0.0.40
codegen_flags: <defaults>
</compile_context>

<pallas_src>
import functools

import jax
import jax.numpy as jnp
from jax.experimental import pallas as pl
from jax.experimental.pallas import tpu as pltpu


# ----------------------------------------------------------------------------
# Tiling constants (safe on v5e/v6e/v7x)
# ----------------------------------------------------------------------------
_LANE = 512            # lane-dense last dim (multiple of 128)
_MAX_TILE_ROWS = 512   # 512x512 f32 = 1 MiB/block; 3 arrays x 2 bufs = 6 MiB VMEM
_MAX_BATCH_TILE = 256


def _round_up(x: int, m: int) -> int:
    return (x + m - 1) // m * m


def _cdiv(a: int, b: int) -> int:
    return (a + b - 1) // b


# ----------------------------------------------------------------------------
# Pallas kernels
# ----------------------------------------------------------------------------
def _ema_update_kernel(ema_ref, param_ref, out_ref, *, decay: float):
    # ema_new = ema - (1 - decay) * (ema - param)  ==  decay*ema + (1-decay)*param
    e = ema_ref[...]
    p = param_ref[...]
    out_ref[...] = e - (1.0 - decay) * (e - p)


def _linear_fwd_kernel(x_ref, w_ref, b_ref, o_ref):
    # y = x @ W + b   (x: [tm, K_pad], W: [K_pad, N_pad], b: [1, N_pad])
    acc = jnp.dot(x_ref[...], w_ref[...], preferred_element_type=jnp.float32)
    o_ref[...] = (acc + b_ref[...].astype(jnp.float32)).astype(o_ref.dtype)


# ----------------------------------------------------------------------------
# Packed EMA state: pack once at init, keep packed forever, unpack on publish
# ----------------------------------------------------------------------------
def make_pack_meta(params):
    """Static packing metadata (shapes / dtypes / balanced tiling)."""
    leaves, treedef = jax.tree_util.tree_flatten(params)
    shapes = tuple(l.shape for l in leaves)
    dtypes = tuple(l.dtype for l in leaves)
    sizes = tuple(int(l.size) for l in leaves)
    n = int(sum(sizes))

    rows0 = _round_up(_cdiv(n, _LANE), 8)            # sublane-aligned row count
    num_blocks = _cdiv(rows0, _MAX_TILE_ROWS)
    block_rows = _round_up(_cdiv(rows0, num_blocks), 8)  # balanced blocks, <= 7 pad
    rows = num_blocks * block_rows

    return dict(treedef=treedef, shapes=shapes, dtypes=dtypes, sizes=sizes,
                n=n, rows=rows, block_rows=block_rows, num_blocks=num_blocks)


def pack_tree(params, meta):
    """Pack a parameter pytree into the lane-dense (rows, _LANE) f32 buffer."""
    leaves, treedef = jax.tree_util.tree_flatten(params)
    assert treedef == meta["treedef"], "parameter tree structure mismatch"
    flat = jnp.concatenate([l.astype(jnp.float32).ravel() for l in leaves])
    padded = meta["rows"] * _LANE
    buf = jnp.zeros((padded,), jnp.float32).at[:meta["n"]].set(flat)
    return buf.reshape(meta["rows"], _LANE)


def unpack_tree(packed, meta):
    """Unpack the packed f32 buffer back into original shapes / dtypes."""
    flat = packed.reshape(-1)[:meta["n"]]
    leaves, off = [], 0
    for shp, dt, sz in zip(meta["shapes"], meta["dtypes"], meta["sizes"]):
        leaves.append(flat[off:off + sz].reshape(shp).astype(dt))
        off += sz
    return jax.tree_util.tree_unflatten(meta["treedef"], leaves)


# ----------------------------------------------------------------------------
# EMA update: one fused, aliased, donated pallas_call over the packed buffer
# ----------------------------------------------------------------------------
@functools.partial(jax.jit, static_argnames=("decay", "block_rows"),
                   donate_argnums=(0,))
def _ema_update_packed(ema_packed, model_packed, *, decay: float, block_rows: int):
    rows, lane = ema_packed.shape
    nbytes = rows * lane * 4
    return pl.pallas_call(
        functools.partial(_ema_update_kernel, decay=float(decay)),
        out_shape=jax.ShapeDtypeStruct((rows, lane), jnp.float32),
        grid=(rows // block_rows,),
        in_specs=[
            pl.BlockSpec((block_rows, lane), lambda i: (i, 0)),
            pl.BlockSpec((block_rows, lane), lambda i: (i, 0)),
        ],
        out_specs=pl.BlockSpec((block_rows, lane), lambda i: (i, 0)),
        input_output_aliases={0: 0},          # true in-place: input 0 is donated
        cost_estimate=pl.CostEstimate(
            flops=3 * rows * lane, transcendentals=0, bytes_accessed=3 * nbytes),
        compiler_params=pltpu.CompilerParams(
            dimension_semantics=("parallel",)),
    )(ema_packed, model_packed)


def ema_update(ema_packed, model_packed, decay: float, meta):
    """One EMA step; ema_packed is consumed (donated) and a new handle returned."""
    return _ema_update_packed(ema_packed, model_packed,
                              decay=float(decay), block_rows=meta["block_rows"])


# ----------------------------------------------------------------------------
# Publish (unpack + pre-pad Linear weights) and forward
# ----------------------------------------------------------------------------
def publish_linear(ema_packed, meta):
    """Unpack the EMA Linear weights and pre-pad them once (hoisted out of the
    per-call forward path).  Call only when the EMA state has changed."""
    params = unpack_tree(ema_packed, meta)
    w, b = params["w"], params["b"]
    K, N = w.shape
    K_pad, N_pad = _round_up(K, 128), _round_up(N, 128)
    w_p = jnp.zeros((K_pad, N_pad), w.dtype).at[:K, :N].set(w)
    b_p = jnp.zeros((1, N_pad), b.dtype).at[:, :N].set(b.reshape(1, N))
    return params, w_p, b_p


@functools.partial(jax.jit, static_argnames=("out_features",))
def linear_forward(x, w_p, b_p, *, out_features: int):
    """forward(inputs) = ema_model(inputs) = x @ W + b, with pre-padded W / b."""
    B, K = x.shape
    K_pad, N_pad = w_p.shape

    B_pad0 = _round_up(B, 8)
    block_rows = min(B_pad0, _MAX_BATCH_TILE)
    num_blocks = _cdiv(B_pad0, block_rows)
    B_pad = num_blocks * block_rows

    x_p = jnp.zeros((B_pad, K_pad), x.dtype).at[:B, :K].set(x)

    out = pl.pallas_call(
        _linear_fwd_kernel,
        out_shape=jax.ShapeDtypeStruct((B_pad, N_pad), x.dtype),
        grid=(num_blocks,),
        in_specs=[
            pl.BlockSpec((block_rows, K_pad), lambda i: (i, 0)),
            pl.BlockSpec((K_pad, N_pad), lambda i: (0, 0)),
            pl.BlockSpec((1, N_pad), lambda i: (0, 0)),
        ],
        out_specs=pl.BlockSpec((block_rows, N_pad), lambda i: (i, 0)),
        cost_estimate=pl.CostEstimate(
            flops=2 * B_pad * K_pad * N_pad, transcendentals=0,
            bytes_accessed=(B_pad * K_pad + K_pad * N_pad + N_pad + B_pad * N_pad) * 4),
        compiler_params=pltpu.CompilerParams(
            dimension_semantics=("parallel",)),
    )(x_p, w_p, b_p)
    return out[:B, :out_features]


# ----------------------------------------------------------------------------
# Demo / correctness check
# ----------------------------------------------------------------------------
if __name__ == "__main__":
    key = jax.random.PRNGKey(0)
    k_x, k_w, k_b, k_dw, k_db = jax.random.split(key, 5)

    batch, in_f, out_f = 8, 32, 32
    decay = 0.99

    # Inner "model": Linear layer with weight stored as (in, out) so y = x@W+b
    # (equivalent to PyTorch's y = x @ W_pt.T + b with W = W_pt.T).
    w_model0 = jax.random.normal(k_w, (in_f, out_f), dtype=jnp.float32) * 0.1
    b_model0 = jax.random.normal(k_b, (1, out_f), dtype=jnp.float32) * 0.1
    model_params0 = {"w": w_model0, "b": b_model0}

    # deepcopy in __init__: EMA state starts equal to the model params and is
    # packed ONCE into the canonical lane-dense buffer it lives in forever.
    meta = make_pack_meta(model_params0)
    ema_packed = pack_tree(model_params0, meta)

    # Simulate one training step having changed the model params.
    w_model = w_model0 + 0.01 * jax.random.normal(k_dw, (in_f, out_f), dtype=jnp.float32)
    b_model = b_model0 + 0.01 * jax.random.normal(k_db, (1, out_f), dtype=jnp.float32)
    model_params = {"w": w_model, "b": b_model}
    # In a real training loop the model params would also live packed; for the
    # demo we pack them here (one pass over the model tree, not the EMA tree).
    model_packed = pack_tree(model_params, meta)

    # update(): one fused, donated, in-place Pallas call over the whole tree.
    ema_packed = ema_update(ema_packed, model_packed, decay, meta)

    # Publish: unpack + pre-pad Linear weights once per update (not per forward).
    ema_params, w_p, b_p = publish_linear(ema_packed, meta)

    # forward(inputs) -> ema_model(inputs)
    x = jax.random.normal(k_x, (batch, in_f), dtype=jnp.float32)
    y = linear_forward(x, w_p, b_p, out_features=out_f)
    y = jax.block_until_ready(y)

    # Plain-JAX reference.
    w_ema_ref = w_model0 - (1.0 - decay) * (w_model0 - w_model)
    b_ema_ref = b_model0 - (1.0 - decay) * (b_model0 - b_model)
    assert jnp.allclose(ema_params["w"], w_ema_ref, atol=1e-6, rtol=1e-6), "EMA w mismatch"
    assert jnp.allclose(ema_params["b"], b_ema_ref, atol=1e-6, rtol=1e-6), "EMA b mismatch"

    y_ref = x @ w_ema_ref + b_ema_ref
    assert jnp.allclose(y, y_ref, atol=1e-5, rtol=1e-5), "forward mismatch vs reference"
    print("KERNEL_OK")
</pallas_src>

<mosaic_0001>
module attributes {stable_mosaic.version = 11 : i64} {
  func.func @_ema_update_kernel(%arg0: i32, %arg1: memref<8x512xf32, #tpu.memory_space<vmem>>, %arg2: memref<8x512xf32, #tpu.memory_space<vmem>>, %arg3: memref<8x512xf32, #tpu.memory_space<vmem>>) attributes {dimension_semantics = [#tpu.dimension_semantics<parallel>], iteration_bounds = array<i64: 1>, scalar_prefetch = 0 : i64, scratch_operands = 0 : i64, tpu.core_type = #tpu.core_type<tc>, window_params = [{transform_indices = @transform_0, window_bounds = array<i64: 8, 512>}, {transform_indices = @transform_1, window_bounds = array<i64: 8, 512>}, {transform_indices = @transform_2, window_bounds = array<i64: 8, 512>}]} {
    %c0 = arith.constant 0 : index
    %c0_0 = arith.constant 0 : index
    %0 = vector.load %arg1[%c0, %c0_0] : memref<8x512xf32, #tpu.memory_space<vmem>>, vector<8x512xf32>
    %c0_1 = arith.constant 0 : index
    %c0_2 = arith.constant 0 : index
    %1 = vector.load %arg2[%c0_1, %c0_2] : memref<8x512xf32, #tpu.memory_space<vmem>>, vector<8x512xf32>
    %2 = arith.subf %0, %1 : vector<8x512xf32>
    %cst = arith.constant 0.00999999977 : f32
    %3 = vector.broadcast %cst : f32 to vector<8x512xf32>
    %4 = arith.mulf %3, %2 : vector<8x512xf32>
    %5 = arith.subf %0, %4 : vector<8x512xf32>
    %c0_3 = arith.constant 0 : index
    %c0_4 = arith.constant 0 : index
    %6 = vector.load %arg3[%c0_3, %c0_4] : memref<8x512xf32, #tpu.memory_space<vmem>>, vector<8x512xf32>
    tpu.vector_store %arg3[%c0_3, %c0_4], %5 {strides = array<i32>} : memref<8x512xf32, #tpu.memory_space<vmem>>, vector<8x512xf32>,
    return
  }
  func.func @transform_0(%arg0: i32) -> (i32, i32) {
    %c0_i32 = arith.constant 0 : i32
    %c0_i32_0 = arith.constant 0 : i32
    return %arg0, %c0_i32 : i32, i32
  }
  func.func @transform_1(%arg0: i32) -> (i32, i32) {
    %c0_i32 = arith.constant 0 : i32
    %c0_i32_0 = arith.constant 0 : i32
    return %arg0, %c0_i32 : i32, i32
  }
  func.func @transform_2(%arg0: i32) -> (i32, i32) {
    %c0_i32 = arith.constant 0 : i32
    %c0_i32_0 = arith.constant 0 : i32
    return %arg0, %c0_i32 : i32, i32
  }
}

</mosaic_0001>

<llo_original>
// kernel: _ema_update_packed.1
$region0: #{_ema_update_packed.1}
  #allocation0 [shape = 'u32[]', space=smem, size = 0x4, offset = 0x4, fixed_abs, tag = 'smem constant byte address 0x4 - core index']
  #allocation1 [shape = 'u32[72,128]{1,0:T(1,128)}', space=vmem, size = 0x9000, scoped, tag = 'internal scratch']
  %s0 = inlined_call_operand.hbm [shape: f32[8,512], index: 0, kind: input, shape index: {}, may-alias: {0,2}]
  %s1 = inlined_call_operand.hbm [shape: f32[8,512], index: 1, kind: input, shape index: {}]
  %s2 = inlined_call_operand.hbm [shape: f32[8,512], index: 2, kind: output, shape index: {}, may-alias: {0,2}]
  %s3 = sld [smem:[#allocation0]]
  $region26: #{_ema_update_packed.1} parent=0
    _
  %s5 = ssub.s32 1, %s3
  %s6 = scalar_select 0, %s5, %s3
  $region1: #{_ema_update_packed.1} parent=0
    #allocation2 [shape = 'u8[16384]{0}', space=vmem, size = 0x4000, scoped, tag = 'input window, operand 0, single buffered']
    #allocation3 [shape = 's32[1]{0}', space=sflag, size = 0x4, scoped, tag = 'scoped memory for _ema_update_packed.1']
    #allocation4 [shape = 's32[1]{0}', space=sflag, size = 0x4, scoped, tag = 'scoped memory for _ema_update_packed.1']
    #allocation5 [shape = 'u8[16384]{0}', space=vmem, size = 0x4000, scoped, tag = 'input window, operand 1, single buffered']
    #allocation6 [shape = 's32[1]{0}', space=sflag, size = 0x4, scoped, tag = 'scoped memory for _ema_update_packed.1']
    #allocation7 [shape = 'u8[16384]{0}', space=vmem, size = 0x4000, scoped, tag = 'output window, operand 0, single buffered']
    %7 = vsyncpa [#allocation3], 0
    %8 = vsyncpa [#allocation6], 0
    %9 = vsyncpa [#allocation4], 0
    // Predicated region
    $region2: #{_ema_update_packed.1} parent=1 // pred_check
      _
    $region3: #{_ema_update_packed.1} parent=1 // pred_check_branch
      %11 = sbr.rel (0) target = $region5
    $region4: #{_ema_update_packed.1} parent=1 // pred_region
      %13 = vsyncadd [#allocation3], 0
      %s15 = sshll.u32 %s0, 4
      %s16 = int_to_ptr.hbm [resolvable:$true] %s15
      %s17 = sshll.u32 [#allocation2], 4
      %s18 = int_to_ptr.vmem [resolvable:$true] %s17
      %20 = dma.hbm_to_vmem [thread:$0]  %s16, 512, %s18, [#allocation3]
    $region5: #{_ema_update_packed.1} parent=1 // pred_fallthru
      _
    // Predicated region
    $region6: #{_ema_update_packed.1} parent=1 // pred_check
      _
    $region7: #{_ema_update_packed.1} parent=1 // pred_check_branch
      %22 = sbr.rel (0) target = $region9
    $region8: #{_ema_update_packed.1} parent=1 // pred_region
      %24 = vsyncadd [#allocation6], 0
      %s26 = sshll.u32 %s1, 4
      %s27 = int_to_ptr.hbm [resolvable:$true] %s26
      %s28 = sshll.u32 [#allocation5], 4
      %s29 = int_to_ptr.vmem [resolvable:$true] %s28
      %31 = dma.hbm_to_vmem [thread:$0]  %s27, 512, %s29, [#allocation6]
    $region9: #{_ema_update_packed.1} parent=1 // pred_fallthru
      _
    // Predicated region
    $region10: #{_ema_update_packed.1} parent=1 // pred_check
      _
    $region11: #{_ema_update_packed.1} parent=1 // pred_check_branch
      %33 = sbr.rel (0) target = $region13
    $region12: #{_ema_update_packed.1} parent=1 // pred_region
      %35 = dma.done [#allocation3], 512
    $region13: #{_ema_update_packed.1} parent=1 // pred_fallthru
      _
    // Predicated region
    $region14: #{_ema_update_packed.1} parent=1 // pred_check
      _
    $region15: #{_ema_update_packed.1} parent=1 // pred_check_branch
      %37 = sbr.rel (0) target = $region17
    $region16: #{_ema_update_packed.1} parent=1 // pred_region
      %39 = dma.done [#allocation6], 512
    $region17: #{_ema_update_packed.1} parent=1 // pred_fallthru
      _
    %v40 = vld [vmem:[#allocation2] sm:$0xff]
    %v41 = vld [vmem:[#allocation2 + $0x8] sm:$0xff]
    %v42 = vld [vmem:[#allocation2 + $0x10] sm:$0xff]
    %v43 = vld [vmem:[#allocation2 + $0x18] sm:$0xff]
    %v44 = vld [vmem:[#allocation5] sm:$0xff]
    %v45 = vld [vmem:[#allocation5 + $0x8] sm:$0xff]
    %v46 = vld [vmem:[#allocation5 + $0x10] sm:$0xff]
    %v47 = vld [vmem:[#allocation5 + $0x18] sm:$0xff]
    %v48 = vsub.f32 %v40, %v44
    %v49 = vsub.f32 %v41, %v45
    %v50 = vsub.f32 %v42, %v46
    %v51 = vsub.f32 %v43, %v47
    %v52 = vmul.f32 %v48, 0.01
    %v53 = vmul.f32 %v49, 0.01
    %v54 = vmul.f32 %v50, 0.01
    %v55 = vmul.f32 %v51, 0.01
    %v56 = vsub.f32 %v40, %v52
    %v57 = vsub.f32 %v41, %v53
    %v58 = vsub.f32 %v42, %v54
    %v59 = vsub.f32 %v43, %v55
    %60 = vst [vmem:[#allocation7] sm:$0xff] %v56
    %61 = vst [vmem:[#allocation7 + $0x8] sm:$0xff] %v57
    %62 = vst [vmem:[#allocation7 + $0x10] sm:$0xff] %v58
    %63 = vst [vmem:[#allocation7 + $0x18] sm:$0xff] %v59
    // Predicated region
    $region18: #{_ema_update_packed.1} parent=1 // pred_check
      _
    $region19: #{_ema_update_packed.1} parent=1 // pred_check_branch
      %65 = sbr.rel (0) target = $region21
    $region20: #{_ema_update_packed.1} parent=1 // pred_region
      %67 = vsyncadd [#allocation4], 0
      %s69 = sshll.u32 [#allocation7], 4
      %s70 = int_to_ptr.vmem [resolvable:$true] %s69
      %s71 = sshll.u32 %s2, 4
      %s72 = int_to_ptr.hbm [resolvable:$true] %s71
      %74 = dma.vmem_to_hbm [thread:$0]  %s70, 512, %s72, [#allocation4]
    $region21: #{_ema_update_packed.1} parent=1 // pred_fallthru
      _
    // Predicated region
    $region22: #{_ema_update_packed.1} parent=1 // pred_check
      _
    $region23: #{_ema_update_packed.1} parent=1 // pred_check_branch
      %76 = sbr.rel (0) target = $region25
    $region24: #{_ema_update_packed.1} parent=1 // pred_region
      %78 = dma.done [#allocation4], 512
    $region25: #{_ema_update_packed.1} parent=1 // pred_fallthru
      _
    %79 = vsyncpa [#allocation3], 1
    %80 = vsyncpa [#allocation6], 1
    %81 = vsyncpa [#allocation4], 1

</llo_original>
